<compile_context>
chip_gen: v5e
topology: v5e:2x2
jax: 0.10.0
libtpu: 0.0.40
codegen_flags: <defaults>
</compile_context>

<pallas_src>
import jax
import jax.numpy as jnp
from jax.experimental import pallas as pl
from jax.experimental.pallas import tpu as pltpu


def multi_attn_kernel(obj_ref, orig_ref, w_ref, b_ref, out_ref):
    # obj_ref : (Cin,  TP)      object features, pixels in lanes
    # orig_ref: (Cout, TP)      original features, pixels in lanes
    # w_ref   : (4, Cout, Cin)  the 4 stacked 1x1-conv weights (resident)
    # b_ref   : (4, Cout, 1)    the 4 stacked biases (resident)
    # out_ref : (4, Cout, TP)   original * sigmoid(conv_i(object)), per branch
    obj = obj_ref[...]
    orig = orig_ref[...]
    for br in range(4):  # static unroll over the 4 attention branches
        z = jnp.dot(w_ref[br], obj, preferred_element_type=jnp.float32)  # (Cout, TP)
        z = z + b_ref[br]                                                # lane broadcast
        out_ref[br, :, :] = (orig * jax.nn.sigmoid(z)).astype(out_ref.dtype)


def multi_attn(original, object_, weights, biases, *, tile_p=1024):
    """original, object_: (N, C, H, W) float32 (PyTorch NCHW convention).
    weights: (4, Cout, Cin) 1x1-conv kernels (squeezed), biases: (4, Cout).
    Returns (4, N, Cout, H, W)."""
    N, Cin, H, W = object_.shape
    n_branch, Cout, Cin_w = weights.shape
    assert n_branch == 4 and Cin_w == Cin, "weights must be (4, Cout, Cin)"
    assert original.shape == (N, Cout, H, W), "original must be (N, Cout, H, W)"
    P = H * W

    # Lane-aligned pixel tile; pad the pixel axis instead of asserting divisibility.
    tile_p = int(max(128, min(int(tile_p), pl.cdiv(P, 128) * 128)))
    P_pad = pl.cdiv(P, tile_p) * tile_p

    obj = object_.reshape(N, Cin, P)       # free view, no transpose
    orig = original.reshape(N, Cout, P)    # free view, no transpose
    if P_pad != P:
        obj = jnp.pad(obj, ((0, 0), (0, 0), (0, P_pad - P)))
        orig = jnp.pad(orig, ((0, 0), (0, 0), (0, P_pad - P)))
    b_col = biases.reshape(4, Cout, 1).astype(jnp.float32)
    w_f32 = weights.astype(jnp.float32)

    grid = (N, P_pad // tile_p)

    # Advisory cost hint for XLA scheduling (bandwidth-bound op).
    flops = 2 * N * P * Cin * 4 * Cout + 4 * N * P * Cout * 4
    transcendentals = 4 * N * P * Cout
    bytes_accessed = 4 * (N * P_pad * (Cin + Cout) + 4 * N * P_pad * Cout)

    out = pl.pallas_call(
        multi_attn_kernel,
        out_shape=jax.ShapeDtypeStruct((4, N, Cout, P_pad), jnp.float32),
        grid_spec=pltpu.PrefetchScalarGridSpec(
            num_scalar_prefetch=0,
            grid=grid,
            in_specs=[
                pl.BlockSpec((None, Cin, tile_p), lambda n, p: (n, 0, p)),
                pl.BlockSpec((None, Cout, tile_p), lambda n, p: (n, 0, p)),
                pl.BlockSpec((4, Cout, Cin), lambda n, p: (0, 0, 0)),
                pl.BlockSpec((4, Cout, 1), lambda n, p: (0, 0, 0)),
            ],
            out_specs=pl.BlockSpec((4, None, Cout, tile_p),
                                   lambda n, p: (0, n, 0, p)),
        ),
        compiler_params=pltpu.CompilerParams(
            dimension_semantics=("parallel", "parallel")),
        cost_estimate=pl.CostEstimate(flops=flops,
                                      transcendentals=transcendentals,
                                      bytes_accessed=bytes_accessed),
    )(obj, orig, w_f32, b_col)

    if P_pad != P:
        out = out[..., :P]
    return out.reshape(4, N, Cout, H, W)   # free view, no transpose


def multi_attn_ref(original, object_, weights, biases):
    """Pure-JAX reference (NCHW 1x1 conv via einsum + sigmoid gate)."""
    outs = []
    for i in range(4):
        z = jnp.einsum("oc,nchw->nohw", weights[i], object_) \
            + biases[i][None, :, None, None]
        outs.append(original * jax.nn.sigmoid(z))
    return jnp.stack(outs, axis=0)


if __name__ == "__main__":
    key = jax.random.PRNGKey(0)
    k1, k2, k3, k4 = jax.random.split(key, 4)

    N, C, H, W = 2, 4, 16, 16          # ch_in == ch_out == 4
    original = jax.random.normal(k1, (N, C, H, W), dtype=jnp.float32)
    object_ = jax.random.normal(k2, (N, C, H, W), dtype=jnp.float32)
    # deterministic parameter init for the 4 Conv2d(ch_in, ch_out, 1) branches
    weights = 0.3 * jax.random.normal(k3, (4, C, C), dtype=jnp.float32)   # (branch, Cout, Cin)
    biases = 0.1 * jax.random.normal(k4, (4, C), dtype=jnp.float32)

    out = multi_attn(original, object_, weights, biases)
    out = jax.block_until_ready(out)

    ref = multi_attn_ref(original, object_, weights, biases)
    assert out.shape == (4, N, C, H, W)
    assert jnp.allclose(out, ref, atol=1e-5, rtol=1e-5)

    print("KERNEL_OK")
</pallas_src>

<mosaic_0001>
module attributes {stable_mosaic.version = 11 : i64} {
  func.func @multi_attn_kernel(%arg0: i32, %arg1: i32, %arg2: memref<1x4x256xf32, #tpu.memory_space<vmem>>, %arg3: memref<1x4x256xf32, #tpu.memory_space<vmem>>, %arg4: memref<4x4x4xf32, #tpu.memory_space<vmem>>, %arg5: memref<4x4x1xf32, #tpu.memory_space<vmem>>, %arg6: memref<4x1x4x256xf32, #tpu.memory_space<vmem>>) attributes {dimension_semantics = [#tpu.dimension_semantics<parallel>, #tpu.dimension_semantics<parallel>], iteration_bounds = array<i64: 2, 1>, scalar_prefetch = 0 : i64, scratch_operands = 0 : i64, tpu.core_type = #tpu.core_type<tc>, window_params = [{transform_indices = @transform_0, window_bounds = array<i64: 1, 4, 256>}, {transform_indices = @transform_1, window_bounds = array<i64: 1, 4, 256>}, {pipeline_mode = #tpu.pipeline_mode<synchronous>, transform_indices = @transform_2, window_bounds = array<i64: 4, 4, 4>}, {pipeline_mode = #tpu.pipeline_mode<synchronous>, transform_indices = @transform_3, window_bounds = array<i64: 4, 4, 1>}, {transform_indices = @transform_4, window_bounds = array<i64: 4, 1, 4, 256>}]} {
    %c0 = arith.constant 0 : index
    %c0_0 = arith.constant 0 : index
    %c0_1 = arith.constant 0 : index
    %0 = vector.load %arg2[%c0, %c0_0, %c0_1] : memref<1x4x256xf32, #tpu.memory_space<vmem>>, vector<1x4x256xf32>
    %1 = vector.shape_cast %0 : vector<1x4x256xf32> to vector<4x256xf32>
    %c0_2 = arith.constant 0 : index
    %c0_3 = arith.constant 0 : index
    %c0_4 = arith.constant 0 : index
    %2 = vector.load %arg3[%c0_2, %c0_3, %c0_4] : memref<1x4x256xf32, #tpu.memory_space<vmem>>, vector<1x4x256xf32>
    %3 = vector.shape_cast %2 : vector<1x4x256xf32> to vector<4x256xf32>
    %c0_5 = arith.constant 0 : index
    %c0_6 = arith.constant 0 : index
    %c0_7 = arith.constant 0 : index
    %4 = vector.load %arg4[%c0_5, %c0_6, %c0_7] : memref<4x4x4xf32, #tpu.memory_space<vmem>>, vector<1x4x4xf32>
    %5 = vector.shape_cast %4 : vector<1x4x4xf32> to vector<4x4xf32>
    %cst = arith.constant dense<0.000000e+00> : vector<4x256xf32>
    %6 = tpu.matmul %5, %1, %cst {dimension_numbers = #tpu.dot_dimension_numbers<[1], [0], [0], [1], [0, 0, 1, 1], [], []>} : vector<4x4xf32>, vector<4x256xf32>, vector<4x256xf32> -> vector<4x256xf32>
    %c0_8 = arith.constant 0 : index
    %c0_9 = arith.constant 0 : index
    %c0_10 = arith.constant 0 : index
    %7 = vector.load %arg5[%c0_8, %c0_9, %c0_10] : memref<4x4x1xf32, #tpu.memory_space<vmem>>, vector<1x4x1xf32>
    %8 = vector.shape_cast %7 : vector<1x4x1xf32> to vector<4x1xf32>
    %9 = vector.broadcast %8 : vector<4x1xf32> to vector<4x256xf32>
    %10 = arith.addf %6, %9 : vector<4x256xf32>
    %11 = arith.negf %10 : vector<4x256xf32>
    %12 = math.exp %11 : vector<4x256xf32>
    %cst_11 = arith.constant 1.000000e+00 : f32
    %13 = vector.broadcast %cst_11 : f32 to vector<4x256xf32>
    %14 = arith.addf %13, %12 : vector<4x256xf32>
    %15 = arith.divf %13, %14 : vector<4x256xf32>
    %16 = arith.mulf %3, %15 : vector<4x256xf32>
    %c0_12 = arith.constant 0 : index
    %c0_13 = arith.constant 0 : index
    %c0_14 = arith.constant 0 : index
    %c0_15 = arith.constant 0 : index
    %17 = vector.load %arg6[%c0_12, %c0_13, %c0_14, %c0_15] : memref<4x1x4x256xf32, #tpu.memory_space<vmem>>, vector<1x1x4x256xf32>
    %18 = vector.shape_cast %17 : vector<1x1x4x256xf32> to vector<4x256xf32>
    %19 = vector.shape_cast %16 : vector<4x256xf32> to vector<1x1x4x256xf32>
    tpu.vector_store %arg6[%c0_12, %c0_13, %c0_14, %c0_15], %19 {strides = array<i32>} : memref<4x1x4x256xf32, #tpu.memory_space<vmem>>, vector<1x1x4x256xf32>,
    %c1 = arith.constant 1 : index
    %c0_16 = arith.constant 0 : index
    %c0_17 = arith.constant 0 : index
    %20 = vector.load %arg4[%c1, %c0_16, %c0_17] : memref<4x4x4xf32, #tpu.memory_space<vmem>>, vector<1x4x4xf32>
    %21 = vector.shape_cast %20 : vector<1x4x4xf32> to vector<4x4xf32>
    %cst_18 = arith.constant dense<0.000000e+00> : vector<4x256xf32>
    %22 = tpu.matmul %21, %1, %cst_18 {dimension_numbers = #tpu.dot_dimension_numbers<[1], [0], [0], [1], [0, 0, 1, 1], [], []>} : vector<4x4xf32>, vector<4x256xf32>, vector<4x256xf32> -> vector<4x256xf32>
    %c1_19 = arith.constant 1 : index
    %c0_20 = arith.constant 0 : index
    %c0_21 = arith.constant 0 : index
    %23 = vector.load %arg5[%c1_19, %c0_20, %c0_21] : memref<4x4x1xf32, #tpu.memory_space<vmem>>, vector<1x4x1xf32>
    %24 = vector.shape_cast %23 : vector<1x4x1xf32> to vector<4x1xf32>
    %25 = vector.broadcast %24 : vector<4x1xf32> to vector<4x256xf32>
    %26 = arith.addf %22, %25 : vector<4x256xf32>
    %27 = arith.negf %26 : vector<4x256xf32>
    %28 = math.exp %27 : vector<4x256xf32>
    %cst_22 = arith.constant 1.000000e+00 : f32
    %29 = vector.broadcast %cst_22 : f32 to vector<4x256xf32>
    %30 = arith.addf %29, %28 : vector<4x256xf32>
    %31 = arith.divf %29, %30 : vector<4x256xf32>
    %32 = arith.mulf %3, %31 : vector<4x256xf32>
    %c1_23 = arith.constant 1 : index
    %c0_24 = arith.constant 0 : index
    %c0_25 = arith.constant 0 : index
    %c0_26 = arith.constant 0 : index
    %33 = vector.load %arg6[%c1_23, %c0_24, %c0_25, %c0_26] : memref<4x1x4x256xf32, #tpu.memory_space<vmem>>, vector<1x1x4x256xf32>
    %34 = vector.shape_cast %33 : vector<1x1x4x256xf32> to vector<4x256xf32>
    %35 = vector.shape_cast %32 : vector<4x256xf32> to vector<1x1x4x256xf32>
    tpu.vector_store %arg6[%c1_23, %c0_24, %c0_25, %c0_26], %35 {strides = array<i32>} : memref<4x1x4x256xf32, #tpu.memory_space<vmem>>, vector<1x1x4x256xf32>,
    %c2 = arith.constant 2 : index
    %c0_27 = arith.constant 0 : index
    %c0_28 = arith.constant 0 : index
    %36 = vector.load %arg4[%c2, %c0_27, %c0_28] : memref<4x4x4xf32, #tpu.memory_space<vmem>>, vector<1x4x4xf32>
    %37 = vector.shape_cast %36 : vector<1x4x4xf32> to vector<4x4xf32>
    %cst_29 = arith.constant dense<0.000000e+00> : vector<4x256xf32>
    %38 = tpu.matmul %37, %1, %cst_29 {dimension_numbers = #tpu.dot_dimension_numbers<[1], [0], [0], [1], [0, 0, 1, 1], [], []>} : vector<4x4xf32>, vector<4x256xf32>, vector<4x256xf32> -> vector<4x256xf32>
    %c2_30 = arith.constant 2 : index
    %c0_31 = arith.constant 0 : index
    %c0_32 = arith.constant 0 : index
    %39 = vector.load %arg5[%c2_30, %c0_31, %c0_32] : memref<4x4x1xf32, #tpu.memory_space<vmem>>, vector<1x4x1xf32>
    %40 = vector.shape_cast %39 : vector<1x4x1xf32> to vector<4x1xf32>
    %41 = vector.broadcast %40 : vector<4x1xf32> to vector<4x256xf32>
    %42 = arith.addf %38, %41 : vector<4x256xf32>
    %43 = arith.negf %42 : vector<4x256xf32>
    %44 = math.exp %43 : vector<4x256xf32>
    %cst_33 = arith.constant 1.000000e+00 : f32
    %45 = vector.broadcast %cst_33 : f32 to vector<4x256xf32>
    %46 = arith.addf %45, %44 : vector<4x256xf32>
    %47 = arith.divf %45, %46 : vector<4x256xf32>
    %48 = arith.mulf %3, %47 : vector<4x256xf32>
    %c2_34 = arith.constant 2 : index
    %c0_35 = arith.constant 0 : index
    %c0_36 = arith.constant 0 : index
    %c0_37 = arith.constant 0 : index
    %49 = vector.load %arg6[%c2_34, %c0_35, %c0_36, %c0_37] : memref<4x1x4x256xf32, #tpu.memory_space<vmem>>, vector<1x1x4x256xf32>
    %50 = vector.shape_cast %49 : vector<1x1x4x256xf32> to vector<4x256xf32>
    %51 = vector.shape_cast %48 : vector<4x256xf32> to vector<1x1x4x256xf32>
    tpu.vector_store %arg6[%c2_34, %c0_35, %c0_36, %c0_37], %51 {strides = array<i32>} : memref<4x1x4x256xf32, #tpu.memory_space<vmem>>, vector<1x1x4x256xf32>,
    %c3 = arith.constant 3 : index
    %c0_38 = arith.constant 0 : index
    %c0_39 = arith.constant 0 : index
    %52 = vector.load %arg4[%c3, %c0_38, %c0_39] : memref<4x4x4xf32, #tpu.memory_space<vmem>>, vector<1x4x4xf32>
    %53 = vector.shape_cast %52 : vector<1x4x4xf32> to vector<4x4xf32>
    %cst_40 = arith.constant dense<0.000000e+00> : vector<4x256xf32>
    %54 = tpu.matmul %53, %1, %cst_40 {dimension_numbers = #tpu.dot_dimension_numbers<[1], [0], [0], [1], [0, 0, 1, 1], [], []>} : vector<4x4xf32>, vector<4x256xf32>, vector<4x256xf32> -> vector<4x256xf32>
    %c3_41 = arith.constant 3 : index
    %c0_42 = arith.constant 0 : index
    %c0_43 = arith.constant 0 : index
    %55 = vector.load %arg5[%c3_41, %c0_42, %c0_43] : memref<4x4x1xf32, #tpu.memory_space<vmem>>, vector<1x4x1xf32>
    %56 = vector.shape_cast %55 : vector<1x4x1xf32> to vector<4x1xf32>
    %57 = vector.broadcast %56 : vector<4x1xf32> to vector<4x256xf32>
    %58 = arith.addf %54, %57 : vector<4x256xf32>
    %59 = arith.negf %58 : vector<4x256xf32>
    %60 = math.exp %59 : vector<4x256xf32>
    %cst_44 = arith.constant 1.000000e+00 : f32
    %61 = vector.broadcast %cst_44 : f32 to vector<4x256xf32>
    %62 = arith.addf %61, %60 : vector<4x256xf32>
    %63 = arith.divf %61, %62 : vector<4x256xf32>
    %64 = arith.mulf %3, %63 : vector<4x256xf32>
    %c3_45 = arith.constant 3 : index
    %c0_46 = arith.constant 0 : index
    %c0_47 = arith.constant 0 : index
    %c0_48 = arith.constant 0 : index
    %65 = vector.load %arg6[%c3_45, %c0_46, %c0_47, %c0_48] : memref<4x1x4x256xf32, #tpu.memory_space<vmem>>, vector<1x1x4x256xf32>
    %66 = vector.shape_cast %65 : vector<1x1x4x256xf32> to vector<4x256xf32>
    %67 = vector.shape_cast %64 : vector<4x256xf32> to vector<1x1x4x256xf32>
    tpu.vector_store %arg6[%c3_45, %c0_46, %c0_47, %c0_48], %67 {strides = array<i32>} : memref<4x1x4x256xf32, #tpu.memory_space<vmem>>, vector<1x1x4x256xf32>,
    return
  }
  func.func @transform_0(%arg0: i32, %arg1: i32) -> (i32, i32, i32) {
    %c0_i32 = arith.constant 0 : i32
    %c0_i32_0 = arith.constant 0 : i32
    return %arg0, %c0_i32, %arg1 : i32, i32, i32
  }
  func.func @transform_1(%arg0: i32, %arg1: i32) -> (i32, i32, i32) {
    %c0_i32 = arith.constant 0 : i32
    %c0_i32_0 = arith.constant 0 : i32
    return %arg0, %c0_i32, %arg1 : i32, i32, i32
  }
  func.func @transform_2(%arg0: i32, %arg1: i32) -> (i32, i32, i32) {
    %c0_i32 = arith.constant 0 : i32
    %c0_i32_0 = arith.constant 0 : i32
    %c0_i32_1 = arith.constant 0 : i32
    %c0_i32_2 = arith.constant 0 : i32
    return %c0_i32, %c0_i32_0, %c0_i32_1 : i32, i32, i32
  }
  func.func @transform_3(%arg0: i32, %arg1: i32) -> (i32, i32, i32) {
    %c0_i32 = arith.constant 0 : i32
    %c0_i32_0 = arith.constant 0 : i32
    %c0_i32_1 = arith.constant 0 : i32
    %c0_i32_2 = arith.constant 0 : i32
    return %c0_i32, %c0_i32_0, %c0_i32_1 : i32, i32, i32
  }
  func.func @transform_4(%arg0: i32, %arg1: i32) -> (i32, i32, i32, i32) {
    %c0_i32 = arith.constant 0 : i32
    %c0_i32_0 = arith.constant 0 : i32
    %c0_i32_1 = arith.constant 0 : i32
    return %c0_i32, %arg0, %c0_i32_0, %arg1 : i32, i32, i32, i32
  }
}

</mosaic_0001>

<llo_original>
// kernel: tpu_custom_call.1
$region0: #{tpu_custom_call.1}
  #allocation0 [shape = 'u32[]', space=smem, size = 0x4, offset = 0x4, fixed_abs, tag = 'smem constant byte address 0x4 - core index']
  #allocation1 [shape = 'u32[72,128]{1,0:T(1,128)}', space=vmem, size = 0x9000, scoped, tag = 'internal scratch']
  %s0 = inlined_call_operand.vmem [shape: f32[2,4,256], index: 0, kind: input, shape index: {}]
  %s1 = inlined_call_operand.hbm [shape: f32[2,4,256], index: 1, kind: input, shape index: {}]
  %s2 = inlined_call_operand.hbm [shape: f32[4,4,4], index: 2, kind: input, shape index: {}]
  %s3 = inlined_call_operand.vmem [shape: f32[4,4,1], index: 3, kind: input, shape index: {}]
  %s4 = inlined_call_operand.hbm [shape: f32[4,2,4,256], index: 4, kind: output, shape index: {}]
  %s5 = sld [smem:[#allocation0]]
  $region57: #{tpu_custom_call.1} parent=0
    _
  %s7 = ssub.s32 1, %s5
  %s8 = scalar_select 0, %s7, %s5
  $region1: #{tpu_custom_call.1} parent=0
    #allocation2 [shape = 'u8[8192]{0}', space=vmem, size = 0x2000, scoped, tag = 'input window, operand 1']
    #allocation3 [shape = 's32[2]{0}', space=sflag, size = 0x8, scoped, tag = 'scoped memory for tpu_custom_call.1']
    #allocation4 [shape = 's32[2]{0}', space=sflag, size = 0x8, scoped, tag = 'scoped memory for tpu_custom_call.1']
    #allocation5 [shape = 'u8[8192]{0}', space=vmem, size = 0x2000, scoped, tag = 'input window, operand 2, single buffered']
    #allocation6 [shape = 's32[1]{0}', space=sflag, size = 0x4, scoped, tag = 'scoped memory for tpu_custom_call.1']
    #allocation7 [shape = 'u8[32768]{0}', space=vmem, size = 0x8000, scoped, tag = 'output window, operand 0']
    %9 = vsyncpa [#allocation3], 0
    %s10 = scalar_lea.sflag [#allocation3], 1
    %11 = vsyncpa %s10, 0
    %12 = vsyncpa [#allocation6], 0
    %13 = vsyncpa [#allocation4], 0
    %s14 = scalar_lea.sflag [#allocation4], 1
    %15 = vsyncpa %s14, 0
    loop: start=0, step=1, limit=4
    $region2: #{tpu_custom_call.1} parent=1 // loop_pre_header
      _
    $region3: #{tpu_custom_call.1} parent=1 // loop_header
      %s17 = sphi 0, %s21
      %p18 = scmp.ge.s32.totalorder %s17, 4
      %s24 = sphi 0, %s36
      %s25 = sphi 0, %s32
      %s26 = sphi 0, %s24
      %s27 = sphi 0, %s25
      %s28 = sphi 0, %s26
      %s29 = sphi 0, %s27
      %s41 = sphi 0, %s43
      %s44 = sphi 0, %s41
      %s45 = sphi 0, %s44
      %s61 = sphi 0, %s45
      %s69 = sphi 0, %s71
      %s72 = sphi 0, %s69
      %s73 = sphi 0, %s72
      %s89 = sphi 0, %s73
      %s93 = sphi 0, %s93
      %s95 = sphi 0, %s93
      %s96 = sphi 0, %s95
      %s110 = sphi 0, %s96
      %s114 = sphi 0, %s114
      %s116 = sphi 0, %s114
      %s117 = sphi 0, %s116
      %s131 = sphi 0, %s117
      %s139 = sphi 0, %s141
      %s142 = sphi 0, %s139
      %s143 = sphi 0, %s142
      %s159 = sphi 0, %s143
    $region4: #{tpu_custom_call.1} parent=1 // loop_header_branch
      %20 = sbr.rel (%p18) target = $region8
    $region5: #{tpu_custom_call.1} parent=1 // loop_body
      %s22 = ssub.s32 %s17, 1
      %s23 = ssub.s32 %s17, 2
      %s30 = sadd.s32 1, %s25
      %p31 = scmp.ge.s32.totalorder %s30, 1
      %s32 = scalar_select %p31, 0, %s30
      %s33 = sadd.s32 1, %s24
      %s34 = scalar_select %p31, %s33, %s24
      %p35 = scmp.ge.s32.totalorder %s34, 2
      %s36 = scalar_select %p35, 0, %s34
      %s37 = ssub.s32 %s24, %s36
      %s38 = ssub.s32 %s25, %s32
      %s39 = sor.u32 %s37, %s38
      %p40 = scmp.eq.s32.totalorder %s39, 0
      %s42 = sadd.s32 %s41, 1
      %s43 = scalar_select %p40, %s41, %s42
      %p46 = pneg %p40
      %p47 = scmp.eq.s32.totalorder %s17, 1
      %p48 = por %p46, %p47
      %p49 = scmp.ne.s32.totalorder %s41, %s44
      %p50 = scmp.eq.s32.totalorder %s17, 0
      %p51 = por %p49, %p50
      %p52 = scmp.ne.s32.totalorder %s41, %s44
      %p53 = scmp.eq.s32.totalorder %s22, 1
      %p54 = por %p52, %p53
      %p55 = scmp.ne.s32.totalorder %s44, %s45
      %p56 = scmp.eq.s32.totalorder %s22, 0
      %p57 = por %p55, %p56
      %p58 = scmp.ne.s32.totalorder %s44, %s45
      %p59 = scmp.eq.s32.totalorder %s23, 1
      %p60 = por %p58, %p59
      %p62 = scmp.ne.s32.totalorder %s45, %s61
      %p63 = scmp.eq.s32.totalorder %s23, 0
      %p64 = por %p62, %p63
      %s65 = ssub.s32 %s24, %s36
      %s66 = ssub.s32 %s25, %s32
      %s67 = sor.u32 %s65, %s66
      %p68 = scmp.eq.s32.totalorder %s67, 0
      %s70 = sadd.s32 %s69, 1
      %s71 = scalar_select %p68, %s69, %s70
      %p74 = pneg %p68
      %p75 = scmp.eq.s32.totalorder %s17, 1
      %p76 = por %p74, %p75
      %p77 = scmp.ne.s32.totalorder %s69, %s72
      %p78 = scmp.eq.s32.totalorder %s17, 0
      %p79 = por %p77, %p78
      %p80 = scmp.ne.s32.totalorder %s69, %s72
      %p81 = scmp.eq.s32.totalorder %s22, 1
      %p82 = por %p80, %p81
      %p83 = scmp.ne.s32.totalorder %s72, %s73
      %p84 = scmp.eq.s32.totalorder %s22, 0
      %p85 = por %p83, %p84
      %p86 = scmp.ne.s32.totalorder %s72, %s73
      %p87 = scmp.eq.s32.totalorder %s23, 1
      %p88 = por %p86, %p87
      %p90 = scmp.ne.s32.totalorder %s73, %s89
      %p91 = scmp.eq.s32.totalorder %s23, 0
      %p92 = por %p90, %p91
      %s94 = sadd.s32 %s93, 1
      %p97 = scmp.eq.s32.totalorder %s17, 1
      %p98 = scmp.ne.s32.totalorder %s93, %s95
      %p99 = scmp.eq.s32.totalorder %s17, 0
      %p100 = por %p98, %p99
      %p101 = scmp.ne.s32.totalorder %s93, %s95
      %p102 = scmp.eq.s32.totalorder %s22, 1
      %p103 = por %p101, %p102
      %p104 = scmp.ne.s32.totalorder %s95, %s96
      %p105 = scmp.eq.s32.totalorder %s22, 0
      %p106 = por %p104, %p105
      %p107 = scmp.ne.s32.totalorder %s95, %s96
      %p108 = scmp.eq.s32.totalorder %s23, 1
      %p109 = por %p107, %p108
      %p111 = scmp.ne.s32.totalorder %s96, %s110
      %p112 = scmp.eq.s32.totalorder %s23, 0
      %p113 = por %p111, %p112
      %s115 = sadd.s32 %s114, 1
      %p118 = scmp.eq.s32.totalorder %s17, 1
      %p119 = scmp.ne.s32.totalorder %s114, %s116
      %p120 = scmp.eq.s32.totalorder %s17, 0
      %p121 = por %p119, %p120
      %p122 = scmp.ne.s32.totalorder %s114, %s116
      %p123 = scmp.eq.s32.totalorder %s22, 1
      %p124 = por %p122, %p123
      %p125 = scmp.ne.s32.totalorder %s116, %s117
      %p126 = scmp.eq.s32.totalorder %s22, 0
      %p127 = por %p125, %p126
      %p128 = scmp.ne.s32.totalorder %s116, %s117
      %p129 = scmp.eq.s32.totalorder %s23, 1
      %p130 = por %p128, %p129
      %p132 = scmp.ne.s32.totalorder %s117, %s131
      %p133 = scmp.eq.s32.totalorder %s23, 0
      %p134 = por %p132, %p133
      %s135 = ssub.s32 %s24, %s36
      %s136 = ssub.s32 %s25, %s32
      %s137 = sor.u32 %s135, %s136
      %p138 = scmp.eq.s32.totalorder %s137, 0
      %s140 = sadd.s32 %s139, 1
      %s141 = scalar_select %p138, %s139, %s140
      %p144 = pneg %p138
      %p145 = scmp.eq.s32.totalorder %s17, 1
      %p146 = por %p144, %p145
      %p147 = scmp.ne.s32.totalorder %s139, %s142
      %p148 = scmp.eq.s32.totalorder %s17, 0
      %p149 = por %p147, %p148
      %p150 = scmp.ne.s32.totalorder %s139, %s142
      %p151 = scmp.eq.s32.totalorder %s22, 1
      %p152 = por %p150, %p151
      %p153 = scmp.ne.s32.totalorder %s142, %s143
      %p154 = scmp.eq.s32.totalorder %s22, 0
      %p155 = por %p153, %p154
      %p156 = scmp.ne.s32.totalorder %s142, %s143
      %p157 = scmp.eq.s32.totalorder %s23, 1
      %p158 = por %p156, %p157
      %p160 = scmp.ne.s32.totalorder %s143, %s159
      %p161 = scmp.eq.s32.totalorder %s23, 0
      %p162 = por %p160, %p161
      %p163 = scmp.le.s32.totalorder 1, %s17
      %p164 = scmp.lt.s32.totalorder %s17, 3
      %p165 = pnand %p163, %p164
      %p166 = pneg %p165
      // Predicated region
      $region9: #{tpu_custom_call.1} parent=5 // pred_check
        _
      $region10: #{tpu_custom_call.1} parent=5 // pred_check_branch
        %168 = sbr.rel (%p165) target = $region12
      $region11: #{tpu_custom_call.1} parent=5 // pred_region
        %s169 = ssub.s32 %s17, 1
        // Predicated region
        $region13: #{tpu_custom_call.1} parent=11 // pred_check
          %p170 = pneg %p106
        $region14: #{tpu_custom_call.1} parent=11 // pred_check_branch
          %172 = sbr.rel (%p170) target = $region16
        $region15: #{tpu_custom_call.1} parent=11 // pred_region
          %174 = vsyncadd [#allocation6], 0
          %s175 = sshll.u32 %s2, 4
          %s176 = int_to_ptr.hbm [resolvable:$true] %s175
          %s177 = sshll.u32 [#allocation5], 4
          %s178 = int_to_ptr.vmem [resolvable:$true] %s177
          %183 = dma.hbm_to_vmem [thread:$0]  %s176, 256, %s178, [#allocation6], 64, 64, 4
        $region16: #{tpu_custom_call.1} parent=11 // pred_fallthru
          _
        // Predicated region
        $region17: #{tpu_custom_call.1} parent=11 // pred_check
          %p184 = pneg %p127
        $region18: #{tpu_custom_call.1} parent=11 // pred_check_branch
          %186 = sbr.rel (%p184) target = $region20
        $region19: #{tpu_custom_call.1} parent=11 // pred_region
          _
        $region20: #{tpu_custom_call.1} parent=11 // pred_fallthru
          _
      $region12: #{tpu_custom_call.1} parent=5 // pred_fallthru
        _
      %p187 = scmp.lt.s32.totalorder %s17, 2
      // Predicated region
      $region21: #{tpu_custom_call.1} parent=5 // pred_check
        %p188 = pneg %p187
      $region22: #{tpu_custom_call.1} parent=5 // pred_check_branch
        %190 = sbr.rel (%p188) target = $region24
      $region23: #{tpu_custom_call.1} parent=5 // pred_region
        // Predicated region
        $region25: #{tpu_custom_call.1} parent=23 // pred_check
          %p191 = pneg %p51
        $region26: #{tpu_custom_call.1} parent=23 // pred_check_branch
          %193 = sbr.rel (%p191) target = $region28
        $region27: #{tpu_custom_call.1} parent=23 // pred_region
          %s194 = smul.u32 2, %s25
          %p195 = scmp.lt.s32.totalorder %s24, 1
          %s196 = scalar_select %p195, %s24, 1
          %p197 = scmp.lt.s32.totalorder %s194, 1
          %s198 = scalar_select %p197, %s194, 1
          %s199 = smul.addr %s196, 2
          %s200 = sadd.s32 %s198, %s199
          %s201 = smul.addr %s200, 4
          %s202 = scalar_lea.vmem %s0, %s201
          %s203 = smul.u32 2, %s25
        $region28: #{tpu_custom_call.1} parent=23 // pred_fallthru
          _
        // Predicated region
        $region29: #{tpu_custom_call.1} parent=23 // pred_check
          %p204 = pneg %p79
        $region30: #{tpu_custom_call.1} parent=23 // pred_check_branch
          %206 = sbr.rel (%p204) target = $region32
        $region31: #{tpu_custom_call.1} parent=23 // pred_region
          %s207 = sand.u32 %s69, 1
          %s208 = scalar_lea.sflag [#allocation3], %s207
          %s209 = sand.u32 %s69, 1
          %s210 = smul.addr %s209, 8
          %s211 = scalar_lea.vmem [#allocation2], %s210
          %s212 = smul.u32 2, %s25
          %214 = vsyncadd %s208, 0
          %s215 = smul.addr %s24, 2
          %s216 = sadd.s32 %s212, %s215
          %s217 = smul.addr %s216, 4
          %s218 = scalar_lea.hbm %s1, %s217
          %s220 = sshll.u32 %s218, 4
          %s221 = int_to_ptr.hbm [resolvable:$true] %s220
          %s222 = sshll.u32 %s211, 4
          %s223 = int_to_ptr.vmem [resolvable:$true] %s222
          %225 = dma.hbm_to_vmem [thread:$0]  %s221, 128, %s223, %s208
        $region32: #{tpu_custom_call.1} parent=23 // pred_fallthru
          _
      $region24: #{tpu_custom_call.1} parent=5 // pred_fallthru
        _
      %p226 = scmp.le.s32.totalorder 1, %s17
      %p227 = scmp.lt.s32.totalorder %s17, 3
      %p228 = pnand %p226, %p227
      %p229 = pneg %p228
      // Predicated region
      $region33: #{tpu_custom_call.1} parent=5 // pred_check
        _
      $region34: #{tpu_custom_call.1} parent=5 // pred_check_branch
        %231 = sbr.rel (%p228) target = $region36
      $region35: #{tpu_custom_call.1} parent=5 // pred_region
        %s232 = ssub.s32 %s17, 1
        %s233 = sand.u32 %s72, 1
        %s234 = scalar_lea.sflag [#allocation3], %s233
        %s235 = sand.u32 %s72, 1
        %s236 = smul.addr %s235, 8
        %s237 = scalar_lea.vmem [#allocation2], %s236
        // Predicated region
        $region37: #{tpu_custom_call.1} parent=35 // pred_check
          %p238 = pneg %p85
        $region38: #{tpu_custom_call.1} parent=35 // pred_check_branch
          %240 = sbr.rel (%p238) target = $region40
        $region39: #{tpu_custom_call.1} parent=35 // pred_region
          %242 = dma.done %s234, 128
        $region40: #{tpu_custom_call.1} parent=35 // pred_fallthru
          _
        // Predicated region
        $region41: #{tpu_custom_call.1} parent=35 // pred_check
          %p243 = pneg %p106
        $region42: #{tpu_custom_call.1} parent=35 // pred_check_branch
          %245 = sbr.rel (%p243) target = $region44
        $region43: #{tpu_custom_call.1} parent=35 // pred_region
          %247 = dma.done [#allocation6], 256
        $region44: #{tpu_custom_call.1} parent=35 // pred_fallthru
          _
        %s248 = smul.u32 2, %s27
        %p249 = scmp.lt.s32.totalorder %s26, 1
        %s250 = scalar_select %p249, %s26, 1
        %p251 = scmp.lt.s32.totalorder %s248, 1
        %s252 = scalar_select %p251, %s248, 1
        %s253 = smul.addr %s250, 2
        %s254 = sadd.s32 %s252, %s253
        %s255 = smul.addr %s254, 4
        %s256 = scalar_lea.vmem %s0, %s255
        %p257 = pneg %p57
        %p258 = pneg %p54
        %s259 = sand.u32 %s72, 1
        %s260 = scalar_lea.sflag [#allocation3], %s259
        %s261 = sand.u32 %s72, 1
        %s262 = smul.addr %s261, 8
        %s263 = scalar_lea.vmem [#allocation2], %s262
        %p264 = pneg %p85
        %p265 = pneg %p82
        %p266 = pneg %p106
        %p267 = pneg %p103
        %p268 = pneg %p127
        %p269 = pneg %p124
        %p270 = pneg %p155
        %p271 = pneg %p152
        %s272 = sand.u32 %s142, 1
        %s273 = scalar_lea.sflag [#allocation4], %s272
        %s274 = sand.u32 %s142, 1
        %s275 = smul.addr %s274, 32
        %s276 = scalar_lea.vmem [#allocation7], %s275
        %s277 = smul.u32 2, %s27
        %p278 = scmp.lt.s32.totalorder %s26, 1
        %s279 = scalar_select %p278, %s26, 1
        %p280 = scmp.lt.s32.totalorder %s277, 1
        %s281 = scalar_select %p280, %s277, 1
        %s282 = smul.addr %s279, 2
        %s283 = sadd.s32 %s281, %s282
        %s284 = smul.addr %s283, 4
        %s285 = scalar_lea.vmem %s0, %s284
        %s286 = smul.u32 2, %s27
        %s287 = smul.u32 2, %s27
        %s288 = smul.u32 2, %s27
        %v289 = vld [vmem:[%s285] sm:$0xff]
        %v290 = vld [vmem:[%s237] sm:$0xff]
        %v291 = vld [vmem:[#allocation5] sm:$0xf]
        %v292 = vld [vmem:[%s3] sm:$0xf]
        %294 = vset.pattern.permute.xlu0 0
        %295 = vperm.xlu0 %294, %v292
        %v296 = vpop.permute.xlu0 %295
        %299 = vst [vmem:[#allocation1] ss:$2 sm:$0xff] %v289
        %v300 = vld.sshfl [vmem:[#allocation1] sm:$0xff pattern:$0x75316420]
        %v301 = vld.sshfl [vmem:[#allocation1 + $0x8] sm:$0xff pattern:$0x75316420]
        %vm302 = vcmask 31744
        %v304 = vsel %vm302, %v291, 0
        %vm306 = vcmask 1043456
        %v307 = vsel %vm306, %v300, 0
        %v309 = vsel %vm306, %v301, 0
        %311 = vmatpush.msra.mxu0 0.0
        %312 = vmatpush.msra.mxu0 0.0
        %313 = vmatpush.msra.mxu0 0.0
        %314 = vmatpush.msra.mxu0 0.0
        %315 = vmatpush.msra.mxu0 0.0
        %316 = vmatpush.msra.mxu0 0.0
        %317 = vmatpush.msra.mxu0 0.0
        %318 = vmatpush.msra.mxu0 0.0
        %319 = vmatpush.msra.mxu0 0.0
        %320 = vmatpush.msra.mxu0 0.0
        %321 = vmatpush.msra.mxu0 0.0
        %322 = vmatpush.msra.mxu0 0.0
        %323 = vmatpush.msra.mxu0 0.0
        %324 = vmatpush.msra.mxu0 0.0
        %325 = vmatpush.msra.mxu0 0.0
        %326 = vmatpush.msra.mxu0 %v307
        %327 = vmatmul.f32.gmra.mxu0 %v304
        %v328 = vpop.f32.mrf.mxu0
        %v329 = vadd.f32 %v296, %v328
        %330 = vdwg.mxu0
        %331 = vmatpush.msra.mxu0 0.0
        %332 = vmatpush.msra.mxu0 0.0
        %333 = vmatpush.msra.mxu0 0.0
        %334 = vmatpush.msra.mxu0 0.0
        %335 = vmatpush.msra.mxu0 0.0
        %336 = vmatpush.msra.mxu0 0.0
        %337 = vmatpush.msra.mxu0 0.0
        %338 = vmatpush.msra.mxu0 0.0
        %339 = vmatpush.msra.mxu0 0.0
        %340 = vmatpush.msra.mxu0 0.0
        %341 = vmatpush.msra.mxu0 0.0
        %342 = vmatpush.msra.mxu0 0.0
        %343 = vmatpush.msra.mxu0 0.0
        %344 = vmatpush.msra.mxu0 0.0
        %345 = vmatpush.msra.mxu0 0.0
        %346 = vmatpush.msra.mxu0 %v309
        %347 = vmatmul.f32.gmra.mxu0 %v304
        %v348 = vpop.f32.mrf.mxu0
        %v349 = vadd.f32 %v296, %v348
        %350 = vdwg.mxu0
        %v351 = vxor.u32 %v329, 2147483648
        %v352 = vxor.u32 %v349, 2147483648
        %v353 = vmul.f32 %v351, 1.442695
        %v354 = vpow.pop %v353
        %v355 = vmul.f32 %v352, 1.442695
        %v356 = vpow.pop %v355
        %v357 = vadd.f32 %v354, 1.0
        %v358 = vadd.f32 %v356, 1.0
        %v359 = vrcp.pop %v357
        %v360 = vmul.f32 %v357, %v359
        %v361 = vsub.f32 1.0, %v360
        %v362 = vmul.f32 %v359, %v361
        %v363 = vadd.f32 %v359, %v362
        %vm364 = vweird.f32 %v357
        %vm365 = vweird.f32 %v359
        %vm366 = vmor %vm364, %vm365
        %v367 = vsel %vm366, %v359, %v363
        %v368 = vand.u32 2147483647, %v357
        %vm369 = vcmp.eq.f32.partialorder %v368, 8.507059e+37
        %v370 = vand.u32 %v357, 2147483648
        %v371 = vor.u32 1.1754944e-38, %v370
        %v372 = vsel %vm369, %v371, %v367
        %v373 = vmul.f32 1.0, %v372
        %v374 = vrcp.pop %v358
        %v375 = vmul.f32 %v358, %v374
        %v376 = vsub.f32 1.0, %v375
        %v377 = vmul.f32 %v374, %v376
        %v378 = vadd.f32 %v374, %v377
        %vm379 = vweird.f32 %v358
        %vm380 = vweird.f32 %v374
        %vm381 = vmor %vm379, %vm380
        %v382 = vsel %vm381, %v374, %v378
        %v383 = vand.u32 2147483647, %v358
        %vm384 = vcmp.eq.f32.partialorder %v383, 8.507059e+37
        %v385 = vand.u32 %v358, 2147483648
        %v386 = vor.u32 1.1754944e-38, %v385
        %v387 = vsel %vm384, %v386, %v382
        %v388 = vmul.f32 1.0, %v387
        %v391 = vrot.slane %v388, 4
        %v392 = vsel %vm306, %v373, %v391
        %v394 = vmul.f32 %v290, %v392
        %395 = vst [vmem:[%s276] sm:$0xff] %v394
        %s396 = scalar_lea.vmem [#allocation5], 4
        %v397 = vld [vmem:[%s396] sm:$0xf]
        %s398 = scalar_lea.vmem %s3, 4
        %v399 = vld [vmem:[%s398] sm:$0xf]
        %401 = vset.pattern.permute.xlu0 0
        %402 = vperm.xlu0 %401, %v399
        %v403 = vpop.permute.xlu0 %402
        %405 = vst [vmem:[#allocation1] ss:$2 sm:$0xff] %v289
        %v406 = vld.sshfl [vmem:[#allocation1] sm:$0xff pattern:$0x75316420]
        %v407 = vld.sshfl [vmem:[#allocation1 + $0x8] sm:$0xff pattern:$0x75316420]
        %v409 = vsel %vm302, %v397, 0
        %v411 = vsel %vm306, %v406, 0
        %v413 = vsel %vm306, %v407, 0
        %415 = vmatpush.msra.mxu0 0.0
        %416 = vmatpush.msra.mxu0 0.0
        %417 = vmatpush.msra.mxu0 0.0
        %418 = vmatpush.msra.mxu0 0.0
        %419 = vmatpush.msra.mxu0 0.0
        %420 = vmatpush.msra.mxu0 0.0
        %421 = vmatpush.msra.mxu0 0.0
        %422 = vmatpush.msra.mxu0 0.0
        %423 = vmatpush.msra.mxu0 0.0
        %424 = vmatpush.msra.mxu0 0.0
        %425 = vmatpush.msra.mxu0 0.0
        %426 = vmatpush.msra.mxu0 0.0
        %427 = vmatpush.msra.mxu0 0.0
        %428 = vmatpush.msra.mxu0 0.0
        %429 = vmatpush.msra.mxu0 0.0
        %430 = vmatpush.msra.mxu0 %v411
        %431 = vmatmul.f32.gmra.mxu0 %v409
        %v432 = vpop.f32.mrf.mxu0
        %v433 = vadd.f32 %v403, %v432
        %434 = vdwg.mxu0
        %435 = vmatpush.msra.mxu0 0.0
        %436 = vmatpush.msra.mxu0 0.0
        %437 = vmatpush.msra.mxu0 0.0
        %438 = vmatpush.msra.mxu0 0.0
        %439 = vmatpush.msra.mxu0 0.0
        %440 = vmatpush.msra.mxu0 0.0
        %441 = vmatpush.msra.mxu0 0.0
        %442 = vmatpush.msra.mxu0 0.0
        %443 = vmatpush.msra.mxu0 0.0
        %444 = vmatpush.msra.mxu0 0.0
        %445 = vmatpush.msra.mxu0 0.0
        %446 = vmatpush.msra.mxu0 0.0
        %447 = vmatpush.msra.mxu0 0.0
        %448 = vmatpush.msra.mxu0 0.0
        %449 = vmatpush.msra.mxu0 0.0
        %450 = vmatpush.msra.mxu0 %v413
        %451 = vmatmul.f32.gmra.mxu0 %v409
        %v452 = vpop.f32.mrf.mxu0
        %v453 = vadd.f32 %v403, %v452
        %454 = vdwg.mxu0
        %v455 = vxor.u32 %v433, 2147483648
        %v456 = vxor.u32 %v453, 2147483648
        %v457 = vmul.f32 %v455, 1.442695
        %v458 = vpow.pop %v457
        %v459 = vmul.f32 %v456, 1.442695
        %v460 = vpow.pop %v459
        %v461 = vadd.f32 %v458, 1.0
        %v462 = vadd.f32 %v460, 1.0
        %v463 = vrcp.pop %v461
        %v464 = vmul.f32 %v461, %v463
        %v465 = vsub.f32 1.0, %v464
        %v466 = vmul.f32 %v463, %v465
        %v467 = vadd.f32 %v463, %v466
        %vm468 = vweird.f32 %v461
        %vm469 = vweird.f32 %v463
        %vm470 = vmor %vm468, %vm469
        %v471 = vsel %vm470, %v463, %v467
        %v472 = vand.u32 2147483647, %v461
        %vm473 = vcmp.eq.f32.partialorder %v472, 8.507059e+37
        %v474 = vand.u32 %v461, 2147483648
        %v475 = vor.u32 1.1754944e-38, %v474
        %v476 = vsel %vm473, %v475, %v471
        %v477 = vmul.f32 1.0, %v476
        %v478 = vrcp.pop %v462
        %v479 = vmul.f32 %v462, %v478
        %v480 = vsub.f32 1.0, %v479
        %v481 = vmul.f32 %v478, %v480
        %v482 = vadd.f32 %v478, %v481
        %vm483 = vweird.f32 %v462
        %vm484 = vweird.f32 %v478
        %vm485 = vmor %vm483, %vm484
        %v486 = vsel %vm485, %v478, %v482
        %v487 = vand.u32 2147483647, %v462
        %vm488 = vcmp.eq.f32.partialorder %v487, 8.507059e+37
        %v489 = vand.u32 %v462, 2147483648
        %v490 = vor.u32 1.1754944e-38, %v489
        %v491 = vsel %vm488, %v490, %v486
        %v492 = vmul.f32 1.0, %v491
        %v495 = vrot.slane %v492, 4
        %v496 = vsel %vm306, %v477, %v495
        %v498 = vmul.f32 %v290, %v496
        %s499 = scalar_lea.vmem %s276, 8 [#allocation7]
        %500 = vst [vmem:[%s499] sm:$0xff] %v498
        %s501 = scalar_lea.vmem [#allocation5], 8
        %v502 = vld [vmem:[%s501] sm:$0xf]
        %s503 = scalar_lea.vmem %s3, 8
        %v504 = vld [vmem:[%s503] sm:$0xf]
        %506 = vset.pattern.permute.xlu0 0
        %507 = vperm.xlu0 %506, %v504
        %v508 = vpop.permute.xlu0 %507
        %510 = vst [vmem:[#allocation1] ss:$2 sm:$0xff] %v289
        %v511 = vld.sshfl [vmem:[#allocation1] sm:$0xff pattern:$0x75316420]
        %v512 = vld.sshfl [vmem:[#allocation1 + $0x8] sm:$0xff pattern:$0x75316420]
        %v514 = vsel %vm302, %v502, 0
        %v516 = vsel %vm306, %v511, 0
        %v518 = vsel %vm306, %v512, 0
        %520 = vmatpush.msra.mxu0 0.0
        %521 = vmatpush.msra.mxu0 0.0
        %522 = vmatpush.msra.mxu0 0.0
        %523 = vmatpush.msra.mxu0 0.0
        %524 = vmatpush.msra.mxu0 0.0
        %525 = vmatpush.msra.mxu0 0.0
        %526 = vmatpush.msra.mxu0 0.0
        %527 = vmatpush.msra.mxu0 0.0
        %528 = vmatpush.msra.mxu0 0.0
        %529 = vmatpush.msra.mxu0 0.0
        %530 = vmatpush.msra.mxu0 0.0
        %531 = vmatpush.msra.mxu0 0.0
        %532 = vmatpush.msra.mxu0 0.0
        %533 = vmatpush.msra.mxu0 0.0
        %534 = vmatpush.msra.mxu0 0.0
        %535 = vmatpush.msra.mxu0 %v516
        %536 = vmatmul.f32.gmra.mxu0 %v514
        %v537 = vpop.f32.mrf.mxu0
        %v538 = vadd.f32 %v508, %v537
        %539 = vdwg.mxu0
        %540 = vmatpush.msra.mxu0 0.0
        %541 = vmatpush.msra.mxu0 0.0
        %542 = vmatpush.msra.mxu0 0.0
        %543 = vmatpush.msra.mxu0 0.0
        %544 = vmatpush.msra.mxu0 0.0
        %545 = vmatpush.msra.mxu0 0.0
        %546 = vmatpush.msra.mxu0 0.0
        %547 = vmatpush.msra.mxu0 0.0
        %548 = vmatpush.msra.mxu0 0.0
        %549 = vmatpush.msra.mxu0 0.0
        %550 = vmatpush.msra.mxu0 0.0
        %551 = vmatpush.msra.mxu0 0.0
        %552 = vmatpush.msra.mxu0 0.0
        %553 = vmatpush.msra.mxu0 0.0
        %554 = vmatpush.msra.mxu0 0.0
        %555 = vmatpush.msra.mxu0 %v518
        %556 = vmatmul.f32.gmra.mxu0 %v514
        %v557 = vpop.f32.mrf.mxu0
        %v558 = vadd.f32 %v508, %v557
        %559 = vdwg.mxu0
        %v560 = vxor.u32 %v538, 2147483648
        %v561 = vxor.u32 %v558, 2147483648
        %v562 = vmul.f32 %v560, 1.442695
        %v563 = vpow.pop %v562
        %v564 = vmul.f32 %v561, 1.442695
        %v565 = vpow.pop %v564
        %v566 = vadd.f32 %v563, 1.0
        %v567 = vadd.f32 %v565, 1.0
        %v568 = vrcp.pop %v566
        %v569 = vmul.f32 %v566, %v568
        %v570 = vsub.f32 1.0, %v569
        %v571 = vmul.f32 %v568, %v570
        %v572 = vadd.f32 %v568, %v571
        %vm573 = vweird.f32 %v566
        %vm574 = vweird.f32 %v568
        %vm575 = vmor %vm573, %vm574
        %v576 = vsel %vm575, %v568, %v572
        %v577 = vand.u32 2147483647, %v566
        %vm578 = vcmp.eq.f32.partialorder %v577, 8.507059e+37
        %v579 = vand.u32 %v566, 2147483648
        %v580 = vor.u32 1.1754944e-38, %v579
        %v581 = vsel %vm578, %v580, %v576
        %v582 = vmul.f32 1.0, %v581
        %v583 = vrcp.pop %v567
        %v584 = vmul.f32 %v567, %v583
        %v585 = vsub.f32 1.0, %v584
        %v586 = vmul.f32 %v583, %v585
        %v587 = vadd.f32 %v583, %v586
        %vm588 = vweird.f32 %v567
        %vm589 = vweird.f32 %v583
        %vm590 = vmor %vm588, %vm589
        %v591 = vsel %vm590, %v583, %v587
        %v592 = vand.u32 2147483647, %v567
        %vm593 = vcmp.eq.f32.partialorder %v592, 8.507059e+37
        %v594 = vand.u32 %v567, 2147483648
        %v595 = vor.u32 1.1754944e-38, %v594
        %v596 = vsel %vm593, %v595, %v591
        %v597 = vmul.f32 1.0, %v596
        %v600 = vrot.slane %v597, 4
        %v601 = vsel %vm306, %v582, %v600
        %v603 = vmul.f32 %v290, %v601
        %s604 = scalar_lea.vmem %s276, 16 [#allocation7]
        %605 = vst [vmem:[%s604] sm:$0xff] %v603
        %s606 = scalar_lea.vmem [#allocation5], 12
        %v607 = vld [vmem:[%s606] sm:$0xf]
        %s608 = scalar_lea.vmem %s3, 12
        %v609 = vld [vmem:[%s608] sm:$0xf]
        %611 = vset.pattern.permute.xlu0 0
        %612 = vperm.xlu0 %611, %v609
        %v613 = vpop.permute.xlu0 %612
        %615 = vst [vmem:[#allocation1] ss:$2 sm:$0xff] %v289
        %v616 = vld.sshfl [vmem:[#allocation1] sm:$0xff pattern:$0x75316420]
        %v617 = vld.sshfl [vmem:[#allocation1 + $0x8] sm:$0xff pattern:$0x75316420]
        %v619 = vsel %vm302, %v607, 0
        %v621 = vsel %vm306, %v616, 0
        %v623 = vsel %vm306, %v617, 0
        %625 = vmatpush.msra.mxu0 0.0
        %626 = vmatpush.msra.mxu0 0.0
        %627 = vmatpush.msra.mxu0 0.0
        %628 = vmatpush.msra.mxu0 0.0
        %629 = vmatpush.msra.mxu0 0.0
        %630 = vmatpush.msra.mxu0 0.0
        %631 = vmatpush.msra.mxu0 0.0
        %632 = vmatpush.msra.mxu0 0.0
        %633 = vmatpush.msra.mxu0 0.0
        %634 = vmatpush.msra.mxu0 0.0
        %635 = vmatpush.msra.mxu0 0.0
        %636 = vmatpush.msra.mxu0 0.0
        %637 = vmatpush.msra.mxu0 0.0
        %638 = vmatpush.msra.mxu0 0.0
        %639 = vmatpush.msra.mxu0 0.0
        %640 = vmatpush.msra.mxu0 %v621
        %641 = vmatmul.f32.gmra.mxu0 %v619
        %v642 = vpop.f32.mrf.mxu0
        %v643 = vadd.f32 %v613, %v642
        %644 = vdwg.mxu0
        %645 = vmatpush.msra.mxu0 0.0
        %646 = vmatpush.msra.mxu0 0.0
        %647 = vmatpush.msra.mxu0 0.0
        %648 = vmatpush.msra.mxu0 0.0
        %649 = vmatpush.msra.mxu0 0.0
        %650 = vmatpush.msra.mxu0 0.0
        %651 = vmatpush.msra.mxu0 0.0
        %652 = vmatpush.msra.mxu0 0.0
        %653 = vmatpush.msra.mxu0 0.0
        %654 = vmatpush.msra.mxu0 0.0
        %655 = vmatpush.msra.mxu0 0.0
        %656 = vmatpush.msra.mxu0 0.0
        %657 = vmatpush.msra.mxu0 0.0
        %658 = vmatpush.msra.mxu0 0.0
        %659 = vmatpush.msra.mxu0 0.0
        %660 = vmatpush.msra.mxu0 %v623
        %661 = vmatmul.f32.gmra.mxu0 %v619
        %v662 = vpop.f32.mrf.mxu0
        %v663 = vadd.f32 %v613, %v662
        %664 = vdwg.mxu0
        %v665 = vxor.u32 %v643, 2147483648
        %v666 = vxor.u32 %v663, 2147483648
        %v667 = vmul.f32 %v665, 1.442695
        %v668 = vpow.pop %v667
        %v669 = vmul.f32 %v666, 1.442695
        %v670 = vpow.pop %v669
        %v671 = vadd.f32 %v668, 1.0
        %v672 = vadd.f32 %v670, 1.0
        %v673 = vrcp.pop %v671
        %v674 = vmul.f32 %v671, %v673
        %v675 = vsub.f32 1.0, %v674
        %v676 = vmul.f32 %v673, %v675
        %v677 = vadd.f32 %v673, %v676
        %vm678 = vweird.f32 %v671
        %vm679 = vweird.f32 %v673
        %vm680 = vmor %vm678, %vm679
        %v681 = vsel %vm680, %v673, %v677
        %v682 = vand.u32 2147483647, %v671
        %vm683 = vcmp.eq.f32.partialorder %v682, 8.507059e+37
        %v684 = vand.u32 %v671, 2147483648
        %v685 = vor.u32 1.1754944e-38, %v684
        %v686 = vsel %vm683, %v685, %v681
        %v687 = vmul.f32 1.0, %v686
        %v688 = vrcp.pop %v672
        %v689 = vmul.f32 %v672, %v688
        %v690 = vsub.f32 1.0, %v689
        %v691 = vmul.f32 %v688, %v690
        %v692 = vadd.f32 %v688, %v691
        %vm693 = vweird.f32 %v672
        %vm694 = vweird.f32 %v688
        %vm695 = vmor %vm693, %vm694
        %v696 = vsel %vm695, %v688, %v692
        %v697 = vand.u32 2147483647, %v672
        %vm698 = vcmp.eq.f32.partialorder %v697, 8.507059e+37
        %v699 = vand.u32 %v672, 2147483648
        %v700 = vor.u32 1.1754944e-38, %v699
        %v701 = vsel %vm698, %v700, %v696
        %v702 = vmul.f32 1.0, %v701
        %v705 = vrot.slane %v702, 4
        %v706 = vsel %vm306, %v687, %v705
        %v708 = vmul.f32 %v290, %v706
        %s709 = scalar_lea.vmem %s276, 24 [#allocation7]
        %710 = vst [vmem:[%s709] sm:$0xff] %v708
        %s711 = sand.u32 %s142, 1
        %s712 = scalar_lea.sflag [#allocation4], %s711
        %s713 = sand.u32 %s142, 1
        %s714 = smul.addr %s713, 32
        %s715 = scalar_lea.vmem [#allocation7], %s714
        // Predicated region
        $region45: #{tpu_custom_call.1} parent=35 // pred_check
          %p716 = pneg %p152
        $region46: #{tpu_custom_call.1} parent=35 // pred_check_branch
          %718 = sbr.rel (%p716) target = $region48
        $region47: #{tpu_custom_call.1} parent=35 // pred_region
          %s719 = smul.u32 2, %s27
          %721 = vsyncadd %s712, 0
          %s722 = smul.addr %s26, 2
          %s723 = sadd.s32 %s719, %s722
          %s724 = smul.addr %s723, 4
          %s725 = scalar_lea.hbm %s4, %s724
          %s726 = sshll.u32 %s715, 4
          %s727 = int_to_ptr.vmem [resolvable:$true] %s726
          %s728 = sshll.u32 %s725, 4
          %s729 = int_to_ptr.hbm [resolvable:$true] %s728
          %734 = dma.vmem_to_hbm [thread:$0]  %s727, 512, %s729, %s712, 128, 256, 8
        $region48: #{tpu_custom_call.1} parent=35 // pred_fallthru
          _
      $region36: #{tpu_custom_call.1} parent=5 // pred_fallthru
        _
      %p735 = scmp.le.s32.totalorder 2, %s17
      // Predicated region
      $region49: #{tpu_custom_call.1} parent=5 // pred_check
        %p736 = pneg %p735
      $region50: #{tpu_custom_call.1} parent=5 // pred_check_branch
        %738 = sbr.rel (%p736) target = $region52
      $region51: #{tpu_custom_call.1} parent=5 // pred_region
        %s739 = ssub.s32 %s17, 2
        // Predicated region
        $region53: #{tpu_custom_call.1} parent=51 // pred_check
          %p740 = pneg %p158
        $region54: #{tpu_custom_call.1} parent=51 // pred_check_branch
          %742 = sbr.rel (%p740) target = $region56
        $region55: #{tpu_custom_call.1} parent=51 // pred_region
          %s743 = sand.u32 %s143, 1
          %s744 = scalar_lea.sflag [#allocation4], %s743
          %s745 = sand.u32 %s143, 1
          %s746 = smul.addr %s745, 32
          %s747 = scalar_lea.vmem [#allocation7], %s746
          %749 = dma.done %s744, 512
        $region56: #{tpu_custom_call.1} parent=51 // pred_fallthru
          _
      $region52: #{tpu_custom_call.1} parent=5 // pred_fallthru
        _
    $region6: #{tpu_custom_call.1} parent=1 // loop_footer
      %s21 = sadd.s32 1, %s17
    $region7: #{tpu_custom_call.1} parent=1 // loop_footer_branch
      %16 = sbr.rel target = $region3
    $region8: #{tpu_custom_call.1} parent=1 // loop_exit
      _
    %750 = vsyncpa [#allocation3], 1
    %s751 = scalar_lea.sflag [#allocation3], 1
    %752 = vsyncpa %s751, 1
    %753 = vsyncpa [#allocation6], 1
    %754 = vsyncpa [#allocation4], 1
    %s755 = scalar_lea.sflag [#allocation4], 1
    %756 = vsyncpa %s755, 1

</llo_original>
